<compile_context>
chip_gen: v5e
topology: v5e:2x2
jax: 0.10.0
libtpu: 0.0.40
codegen_flags: <defaults>
</compile_context>

<pallas_src>
import functools

import jax
import jax.numpy as jnp
from jax.experimental import pallas as pl
from jax.experimental.pallas import tpu as pltpu


def _smooth_onehot_kernel(labels_ref, out_ref, *, scale):
    # labels_ref: (1, TN) int32   -- samples on the lane axis (lane-dense)
    # out_ref:    (C, TN) float32 -- classes on sublanes, samples on lanes
    labels = labels_ref[...]                                     # (1, TN)
    c, tn = out_ref.shape
    class_ids = jax.lax.broadcasted_iota(jnp.int32, (c, tn), 0)  # (C, TN)
    onehot = (class_ids == labels).astype(jnp.float32)           # sublane bcast
    out_ref[...] = onehot * scale + 1.0


def _round_up(x, m):
    return ((x + m - 1) // m) * m


def smooth_one_hot_encoding(labels, num_classes=10, precision=100,
                            block_n=4096, class_major=False):
    """JAX/Pallas equivalent of SmoothOneHotEncoding.forward.

    labels: int array of shape [N] (class indices in [0, num_classes)).
    returns: float32 [N, num_classes] (or [num_classes, N] if class_major).
    """
    if precision <= num_classes:
        raise ValueError(
            'The precision value must be larger than the number of classes')
    # TODO(synk): F.one_hot raises on out-of-range labels; here such labels
    # silently produce an all-ones row (no in-kernel index validation).

    labels = jnp.asarray(labels).astype(jnp.int32).reshape(-1)
    n = labels.shape[0]
    labels_row = labels.reshape(1, n)          # lane-dense label row

    # Block sizing: as large as requested, but (a) a multiple of 128 lanes and
    # (b) capped near n/2 so the grid has >= 2 steps when n is large enough
    # for both v7x TensorCores to get work.
    bn = max(128, min(block_n, _round_up(max(pl.cdiv(n, 2), 1), 128)))
    grid = (pl.cdiv(n, bn),)

    scale = float(precision - num_classes)
    kernel = functools.partial(_smooth_onehot_kernel, scale=scale)

    out_cn = pl.pallas_call(
        kernel,
        out_shape=jax.ShapeDtypeStruct((num_classes, n), jnp.float32),
        grid_spec=pltpu.PrefetchScalarGridSpec(
            num_scalar_prefetch=0,
            grid=grid,
            in_specs=[pl.BlockSpec((1, bn), lambda i: (0, i))],
            out_specs=pl.BlockSpec((num_classes, bn), lambda i: (0, i)),
        ),
        compiler_params=pltpu.CompilerParams(
            dimension_semantics=("parallel",)),
        cost_estimate=pl.CostEstimate(
            flops=3 * n * num_classes,
            transcendentals=0,
            bytes_accessed=n * num_classes * 4 + n * 4),
    )(labels_row)

    if class_major:
        return out_cn          # [C, N], lane-dense, no extra layout pass
    return out_cn.T            # layout plumbing to match PyTorch [N, C]


def _reference(labels, num_classes=10, precision=100):
    onehot = jax.nn.one_hot(labels, num_classes, dtype=jnp.float32)
    return onehot * (precision - num_classes) + 1.0


if __name__ == "__main__":
    key = jax.random.PRNGKey(0)
    num_classes, precision = 10, 100
    n = 300   # deliberately NOT a multiple of the 128-lane block (ragged tail)
    labels = jax.random.randint(key, (n,), 0, num_classes, dtype=jnp.int32)

    out = smooth_one_hot_encoding(labels, num_classes=num_classes,
                                  precision=precision)
    out = jax.block_until_ready(out)

    ref = _reference(labels, num_classes, precision)
    assert out.shape == (n, num_classes), out.shape
    assert out.dtype == jnp.float32, out.dtype
    assert jnp.allclose(out, ref), (out, ref)

    # Class-major fast path (no transpose plumbing), same values.
    out_cn = jax.block_until_ready(
        smooth_one_hot_encoding(labels, num_classes=num_classes,
                                precision=precision, class_major=True))
    assert out_cn.shape == (num_classes, n), out_cn.shape
    assert jnp.allclose(out_cn, ref.T), (out_cn, ref.T)

    print("KERNEL_OK")
</pallas_src>

<mosaic_0001>
module attributes {stable_mosaic.version = 11 : i64} {
  func.func @_smooth_onehot_kernel(%arg0: i32, %arg1: memref<1x256xi32, #tpu.memory_space<vmem>>, %arg2: memref<10x256xf32, #tpu.memory_space<vmem>>) attributes {dimension_semantics = [#tpu.dimension_semantics<parallel>], iteration_bounds = array<i64: 2>, scalar_prefetch = 0 : i64, scratch_operands = 0 : i64, tpu.core_type = #tpu.core_type<tc>, window_params = [{transform_indices = @transform_0, window_bounds = array<i64: 1, 256>}, {transform_indices = @transform_1, window_bounds = array<i64: 10, 256>}]} {
    %c0 = arith.constant 0 : index
    %c0_0 = arith.constant 0 : index
    %0 = vector.load %arg1[%c0, %c0_0] : memref<1x256xi32, #tpu.memory_space<vmem>>, vector<1x256xi32>
    %1 = tpu.iota {dimensions = array<i32: 0>} : vector<10x256xi32>
    %2 = vector.broadcast %0 : vector<1x256xi32> to vector<10x256xi32>
    %3 = arith.cmpi eq, %1, %2 : vector<10x256xi32>
    %4 = arith.extui %3 : vector<10x256xi1> to vector<10x256xi32>
    %5 = arith.sitofp %4 : vector<10x256xi32> to vector<10x256xf32>
    %cst = arith.constant 9.000000e+01 : f32
    %6 = vector.broadcast %cst : f32 to vector<10x256xf32>
    %7 = arith.mulf %5, %6 : vector<10x256xf32>
    %cst_1 = arith.constant 1.000000e+00 : f32
    %8 = vector.broadcast %cst_1 : f32 to vector<10x256xf32>
    %9 = arith.addf %7, %8 : vector<10x256xf32>
    %c0_2 = arith.constant 0 : index
    %c0_3 = arith.constant 0 : index
    %10 = vector.load %arg2[%c0_2, %c0_3] : memref<10x256xf32, #tpu.memory_space<vmem>>, vector<10x256xf32>
    tpu.vector_store %arg2[%c0_2, %c0_3], %9 {strides = array<i32>} : memref<10x256xf32, #tpu.memory_space<vmem>>, vector<10x256xf32>,
    return
  }
  func.func @transform_0(%arg0: i32) -> (i32, i32) {
    %c0_i32 = arith.constant 0 : i32
    %c0_i32_0 = arith.constant 0 : i32
    return %c0_i32, %arg0 : i32, i32
  }
  func.func @transform_1(%arg0: i32) -> (i32, i32) {
    %c0_i32 = arith.constant 0 : i32
    %c0_i32_0 = arith.constant 0 : i32
    return %c0_i32, %arg0 : i32, i32
  }
}

</mosaic_0001>

<llo_original>
// kernel: tpu_custom_call.1
$region0: #{tpu_custom_call.1}
  #allocation0 [shape = 'u32[]', space=smem, size = 0x4, offset = 0x4, fixed_abs, tag = 'smem constant byte address 0x4 - core index']
  #allocation1 [shape = 'u32[72,128]{1,0:T(1,128)}', space=vmem, size = 0x9000, scoped, tag = 'internal scratch']
  %s0 = inlined_call_operand.hbm [shape: s32[1,300], index: 0, kind: input, shape index: {}]
  %s1 = inlined_call_operand.hbm [shape: f32[10,300], index: 1, kind: output, shape index: {}]
  %s2 = sld [smem:[#allocation0]]
  $region41: #{tpu_custom_call.1} parent=0
    _
  %s4 = ssub.s32 1, %s2
  %s5 = scalar_select 0, %s4, %s2
  $region1: #{tpu_custom_call.1} parent=0
    #allocation2 [shape = 'u8[2048]{0}', space=vmem, size = 0x800, scoped, tag = 'input window, operand 0']
    #allocation3 [shape = 's32[2]{0}', space=sflag, size = 0x8, scoped, tag = 'scoped memory for tpu_custom_call.1']
    #allocation4 [shape = 's32[2]{0}', space=sflag, size = 0x8, scoped, tag = 'scoped memory for tpu_custom_call.1']
    #allocation5 [shape = 'u8[32768]{0}', space=vmem, size = 0x8000, scoped, tag = 'output window, operand 0']
    %6 = vsyncpa [#allocation3], 0
    %s7 = scalar_lea.sflag [#allocation3], 1
    %8 = vsyncpa %s7, 0
    %9 = vsyncpa [#allocation4], 0
    %s10 = scalar_lea.sflag [#allocation4], 1
    %11 = vsyncpa %s10, 0
    loop: start=0, step=1, limit=4
    $region2: #{tpu_custom_call.1} parent=1 // loop_pre_header
      _
    $region3: #{tpu_custom_call.1} parent=1 // loop_header
      %s13 = sphi 0, %s17
      %p14 = scmp.ge.s32.totalorder %s13, 4
      %s23 = sphi 0, %s25
      %s26 = sphi 0, %s23
      %s27 = sphi 0, %s26
      %s43 = sphi 0, %s27
      %s49 = sphi 0, %s51
      %s52 = sphi 0, %s49
      %s53 = sphi 0, %s52
      %s69 = sphi 0, %s53
    $region4: #{tpu_custom_call.1} parent=1 // loop_header_branch
      %16 = sbr.rel (%p14) target = $region8
    $region5: #{tpu_custom_call.1} parent=1 // loop_body
      %s18 = ssub.s32 %s13, 1
      %s19 = ssub.s32 %s13, 2
      %s20 = sadd.s32 %s13, 1
      %s21 = ssub.s32 %s13, %s20
      %p22 = scmp.eq.s32.totalorder %s21, 0
      %s24 = sadd.s32 %s23, 1
      %s25 = scalar_select %p22, %s23, %s24
      %p28 = pneg %p22
      %p29 = scmp.eq.s32.totalorder %s13, 1
      %p30 = por %p28, %p29
      %p31 = scmp.ne.s32.totalorder %s23, %s26
      %p32 = scmp.eq.s32.totalorder %s13, 0
      %p33 = por %p31, %p32
      %p34 = scmp.ne.s32.totalorder %s23, %s26
      %p35 = scmp.eq.s32.totalorder %s18, 1
      %p36 = por %p34, %p35
      %p37 = scmp.ne.s32.totalorder %s26, %s27
      %p38 = scmp.eq.s32.totalorder %s18, 0
      %p39 = por %p37, %p38
      %p40 = scmp.ne.s32.totalorder %s26, %s27
      %p41 = scmp.eq.s32.totalorder %s19, 1
      %p42 = por %p40, %p41
      %p44 = scmp.ne.s32.totalorder %s27, %s43
      %p45 = scmp.eq.s32.totalorder %s19, 0
      %p46 = por %p44, %p45
      %s47 = ssub.s32 %s13, %s20
      %p48 = scmp.eq.s32.totalorder %s47, 0
      %s50 = sadd.s32 %s49, 1
      %s51 = scalar_select %p48, %s49, %s50
      %p54 = pneg %p48
      %p55 = scmp.eq.s32.totalorder %s13, 1
      %p56 = por %p54, %p55
      %p57 = scmp.ne.s32.totalorder %s49, %s52
      %p58 = scmp.eq.s32.totalorder %s13, 0
      %p59 = por %p57, %p58
      %p60 = scmp.ne.s32.totalorder %s49, %s52
      %p61 = scmp.eq.s32.totalorder %s18, 1
      %p62 = por %p60, %p61
      %p63 = scmp.ne.s32.totalorder %s52, %s53
      %p64 = scmp.eq.s32.totalorder %s18, 0
      %p65 = por %p63, %p64
      %p66 = scmp.ne.s32.totalorder %s52, %s53
      %p67 = scmp.eq.s32.totalorder %s19, 1
      %p68 = por %p66, %p67
      %p70 = scmp.ne.s32.totalorder %s53, %s69
      %p71 = scmp.eq.s32.totalorder %s19, 0
      %p72 = por %p70, %p71
      %p73 = scmp.le.s32.totalorder 1, %s13
      %p74 = scmp.lt.s32.totalorder %s13, 3
      %p75 = pnand %p73, %p74
      %p76 = pneg %p75
      // Predicated region
      $region9: #{tpu_custom_call.1} parent=5 // pred_check
        _
      $region10: #{tpu_custom_call.1} parent=5 // pred_check_branch
        %78 = sbr.rel (%p75) target = $region12
      $region11: #{tpu_custom_call.1} parent=5 // pred_region
        %s79 = ssub.s32 %s13, 1
      $region12: #{tpu_custom_call.1} parent=5 // pred_fallthru
        _
      %p80 = scmp.lt.s32.totalorder %s13, 2
      // Predicated region
      $region13: #{tpu_custom_call.1} parent=5 // pred_check
        %p81 = pneg %p80
      $region14: #{tpu_custom_call.1} parent=5 // pred_check_branch
        %83 = sbr.rel (%p81) target = $region16
      $region15: #{tpu_custom_call.1} parent=5 // pred_region
        // Predicated region
        $region17: #{tpu_custom_call.1} parent=15 // pred_check
          %p84 = pneg %p33
        $region18: #{tpu_custom_call.1} parent=15 // pred_check_branch
          %86 = sbr.rel (%p84) target = $region20
        $region19: #{tpu_custom_call.1} parent=15 // pred_region
          %s87 = sand.u32 %s23, 1
          %s88 = scalar_lea.sflag [#allocation3], %s87
          %s89 = sand.u32 %s23, 1
          %s90 = smul.addr %s89, 2
          %s91 = scalar_lea.vmem [#allocation2], %s90
          %s92 = smul.u32 2, %s13
          %s93 = ssub.s32 3, %s92
          %p94 = scmp.lt.s32.totalorder %s93, 2
          %s95 = scalar_select %p94, %s93, 2
          %s96 = ssub.s32 2, %s95
          %s97 = sshll.u32 %s96, 4
          %98 = vsyncadd %s88, %s97
          %p99 = scmp.ne.s32.totalorder 0, %s95
          %s100 = scalar_lea.hbm %s0, %s92
          %s101 = sshll.u32 %s95, 4
          %s102 = sshll.u32 %s100, 4
          %s103 = int_to_ptr.hbm [resolvable:$true] %s102
          %s104 = sshll.u32 %s91, 4
          %s105 = int_to_ptr.vmem [resolvable:$true] %s104
          %107 = dma.hbm_to_vmem [thread:$0]  (%p99), %s103, %s101, %s105, %s88
        $region20: #{tpu_custom_call.1} parent=15 // pred_fallthru
          _
      $region16: #{tpu_custom_call.1} parent=5 // pred_fallthru
        _
      %p108 = scmp.le.s32.totalorder 1, %s13
      %p109 = scmp.lt.s32.totalorder %s13, 3
      %p110 = pnand %p108, %p109
      %p111 = pneg %p110
      // Predicated region
      $region21: #{tpu_custom_call.1} parent=5 // pred_check
        _
      $region22: #{tpu_custom_call.1} parent=5 // pred_check_branch
        %113 = sbr.rel (%p110) target = $region24
      $region23: #{tpu_custom_call.1} parent=5 // pred_region
        %s114 = ssub.s32 %s13, 1
        %s115 = sand.u32 %s26, 1
        %s116 = scalar_lea.sflag [#allocation3], %s115
        %s117 = sand.u32 %s26, 1
        %s118 = smul.addr %s117, 2
        %s119 = scalar_lea.vmem [#allocation2], %s118
        // Predicated region
        $region25: #{tpu_custom_call.1} parent=23 // pred_check
          %p120 = pneg %p39
        $region26: #{tpu_custom_call.1} parent=23 // pred_check_branch
          %122 = sbr.rel (%p120) target = $region28
        $region27: #{tpu_custom_call.1} parent=23 // pred_region
          %124 = dma.done %s116, 32
        $region28: #{tpu_custom_call.1} parent=23 // pred_fallthru
          _
        %s125 = sand.u32 %s26, 1
        %s126 = scalar_lea.sflag [#allocation3], %s125
        %s127 = sand.u32 %s26, 1
        %s128 = smul.addr %s127, 2
        %s129 = scalar_lea.vmem [#allocation2], %s128
        %p130 = pneg %p39
        %p131 = pneg %p36
        %p132 = pneg %p65
        %p133 = pneg %p62
        %s134 = sand.u32 %s52, 1
        %s135 = scalar_lea.sflag [#allocation4], %s134
        %s136 = sand.u32 %s52, 1
        %s137 = smul.addr %s136, 32
        %s138 = scalar_lea.vmem [#allocation5], %s137
        %s139 = smul.u32 2, %s18
        %s140 = ssub.s32 3, %s139
        %p141 = scmp.lt.s32.totalorder %s140, 2
        %s142 = scalar_select %p141, %s140, 2
        %s143 = smul.u32 2, %s18
        %s144 = ssub.s32 3, %s143
        %p145 = scmp.lt.s32.totalorder %s144, 2
        %s146 = scalar_select %p145, %s144, 2
        %s147 = smul.u32 16, %s146
        %v148 = vld [vmem:[%s119] sm:$0x3]
        %v149 = vlaneseq
        %v150 = vshrl.u32 %v149, 7
        %v151 = vadd.s32 %v150, 8
        %v152 = vperm.slane %v148, 0
        %v153 = vperm.slane %v148, 1
        %vm154 = vcmp.eq.s32.totalorder %v150, %v152
        %vm155 = vcmp.eq.s32.totalorder %v150, %v153
        %vm156 = vcmp.eq.s32.totalorder %v151, %v152
        %vm157 = vcmp.eq.s32.totalorder %v151, %v153
        %v158 = vsel %vm154, 1, 0
        %v159 = vsel %vm155, 1, 0
        %v160 = vsel %vm156, 1, 0
        %v161 = vsel %vm157, 1, 0
        %v162 = vcvt.s32.f32 %v158
        %v163 = vcvt.s32.f32 %v159
        %v164 = vcvt.s32.f32 %v160
        %v165 = vcvt.s32.f32 %v161
        %v166 = vmul.f32 %v162, 90.0
        %v167 = vmul.f32 %v163, 90.0
        %v168 = vmul.f32 %v164, 90.0
        %v169 = vmul.f32 %v165, 90.0
        %v170 = vadd.f32 %v166, 1.0
        %v171 = vadd.f32 %v167, 1.0
        %v172 = vadd.f32 %v168, 1.0
        %v173 = vadd.f32 %v169, 1.0
        %174 = vst [vmem:[%s138] sm:$0xff] %v170
        %175 = vst [vmem:[%s138 + $0x8] sm:$0xff] %v171
        %176 = vst [vmem:[%s138 + $0x10] sm:$0x3] %v172
        %177 = vst [vmem:[%s138 + $0x18] sm:$0x3] %v173
        %s178 = sand.u32 %s52, 1
        %s179 = scalar_lea.sflag [#allocation4], %s178
        %s180 = sand.u32 %s52, 1
        %s181 = smul.addr %s180, 32
        %s182 = scalar_lea.vmem [#allocation5], %s181
        // Predicated region
        $region29: #{tpu_custom_call.1} parent=23 // pred_check
          %p183 = pneg %p62
        $region30: #{tpu_custom_call.1} parent=23 // pred_check_branch
          %185 = sbr.rel (%p183) target = $region32
        $region31: #{tpu_custom_call.1} parent=23 // pred_region
          %s186 = smul.u32 2, %s18
          %s187 = ssub.s32 3, %s186
          %p188 = scmp.lt.s32.totalorder %s187, 2
          %s189 = scalar_select %p188, %s187, 2
          %s190 = smul.u32 16, %s189
          %s191 = ssub.s32 32, %s190
          %s192 = sshll.u32 %s191, 4
          %193 = vsyncadd %s179, %s192
          %p194 = scmp.ne.s32.totalorder 0, %s190
          %s195 = smul.addr %s186, 8
          %s196 = scalar_lea.hbm %s1, %s195
          %s197 = smul.u32 %s189, 8
          %s198 = smul.u32 %s197, 2
          %s199 = sshll.u32 %s182, 4
          %s200 = int_to_ptr.vmem [resolvable:$true] %s199
          %s201 = sshll.u32 %s196, 4
          %s202 = int_to_ptr.hbm [resolvable:$true] %s201
          %s203 = sshll.u32 %s198, 4
          %207 = dma.vmem_to_hbm [thread:$0]  (%p194), %s200, %s203, %s202, %s179, 256, 384, %s197
        $region32: #{tpu_custom_call.1} parent=23 // pred_fallthru
          _
      $region24: #{tpu_custom_call.1} parent=5 // pred_fallthru
        _
      %p208 = scmp.le.s32.totalorder 2, %s13
      // Predicated region
      $region33: #{tpu_custom_call.1} parent=5 // pred_check
        %p209 = pneg %p208
      $region34: #{tpu_custom_call.1} parent=5 // pred_check_branch
        %211 = sbr.rel (%p209) target = $region36
      $region35: #{tpu_custom_call.1} parent=5 // pred_region
        %s212 = ssub.s32 %s13, 2
        // Predicated region
        $region37: #{tpu_custom_call.1} parent=35 // pred_check
          %p213 = pneg %p68
        $region38: #{tpu_custom_call.1} parent=35 // pred_check_branch
          %215 = sbr.rel (%p213) target = $region40
        $region39: #{tpu_custom_call.1} parent=35 // pred_region
          %s216 = sand.u32 %s53, 1
          %s217 = scalar_lea.sflag [#allocation4], %s216
          %s218 = sand.u32 %s53, 1
          %s219 = smul.addr %s218, 32
          %s220 = scalar_lea.vmem [#allocation5], %s219
          %222 = dma.done %s217, 512
        $region40: #{tpu_custom_call.1} parent=35 // pred_fallthru
          _
      $region36: #{tpu_custom_call.1} parent=5 // pred_fallthru
        _
    $region6: #{tpu_custom_call.1} parent=1 // loop_footer
      %s17 = sadd.s32 1, %s13
    $region7: #{tpu_custom_call.1} parent=1 // loop_footer_branch
      %12 = sbr.rel target = $region3
    $region8: #{tpu_custom_call.1} parent=1 // loop_exit
      _
    %223 = vsyncpa [#allocation3], 1
    %s224 = scalar_lea.sflag [#allocation3], 1
    %225 = vsyncpa %s224, 1
    %226 = vsyncpa [#allocation4], 1
    %s227 = scalar_lea.sflag [#allocation4], 1
    %228 = vsyncpa %s227, 1

</llo_original>
